<compile_context>
chip_gen: v6e
topology: v6e:2x2x1
jax: 0.10.0
libtpu: 0.0.40
codegen_flags: <defaults>
</compile_context>

<pallas_src>
import jax
import jax.numpy as jnp
from jax import lax
from jax.experimental import pallas as pl
from jax.experimental.pallas import tpu as pltpu


# ----------------------------------------------------------------------------
# Kernel
# ----------------------------------------------------------------------------
def _head_kernel(f1_ref, f2_ref, w1a_ref, w1b_ref, b1_ref, alpha_ref,
                 w2d_ref, b2d_ref, out_ref):
    # f1_ref/f2_ref : (tb, nhid)  feature tiles (f32 or bf16)
    # w1a_ref/w1b_ref: (nhid, nhid) halves of W1^T      (VMEM-resident)
    # b1_ref, alpha_ref: (1, nhid) f32                  (resident)
    # w2d_ref: (1, nhid) = (W2[:,1]-W2[:,0])^T   b2d_ref: (1, 1) = b2[1]-b2[0]
    # out_ref: (1, tb)   softmax(logits)[:, 1] for this tile (lane-dense)

    # Linear(2*nhid -> nhid) with the concat folded away:
    #   [f1|f2] @ W1 + b1 == f1 @ W1a + f2 @ W1b + b1     (f32 MXU accumulation)
    h = (jnp.dot(f1_ref[...], w1a_ref[...], preferred_element_type=jnp.float32)
         + jnp.dot(f2_ref[...], w1b_ref[...], preferred_element_type=jnp.float32)
         + b1_ref[...])

    # PReLU(nhid): per-channel negative slope (f32 VPU path).
    h = jnp.where(h > 0.0, h, alpha_ref[...] * h)

    # 2-class softmax, column 1 only:
    #   p1 = sigmoid(h @ (W2[:,1]-W2[:,0]) + (b2[1]-b2[0]))
    # Contract as (1, nhid) x (tb, nhid)^T -> (1, tb) so the result is already
    # lane-dense: full unmasked stores, no (tb, 1) column and no transpose.
    d = lax.dot_general(w2d_ref[...], h,
                        dimension_numbers=(((1,), (1,)), ((), ())),
                        preferred_element_type=jnp.float32) + b2d_ref[...]

    # Exact sigmoid (keeps the single-pair >= 0.5 decision faithful).
    out_ref[...] = 1.0 / (1.0 + jnp.exp(-d))


# ----------------------------------------------------------------------------
# One-time parameter preparation (hoisted out of the forward path)
# ----------------------------------------------------------------------------
def prepare_head_params(params, weight_dtype=jnp.bfloat16):
    """Split W1, fold the 2-class softmax[:,1] into a logit diff, cast weights.

    `params` is the (w1_T, b1, alpha, w2_T, b2) tuple from `init_params`
    (matmul-ready layouts).  Call this ONCE and reuse the result.
    """
    w1, b1, alpha, w2, b2 = params
    nhid = w1.shape[1]
    assert w1.shape == (2 * nhid, nhid)
    w1a = jnp.asarray(w1[:nhid, :], weight_dtype)        # (nhid, nhid)
    w1b = jnp.asarray(w1[nhid:, :], weight_dtype)        # (nhid, nhid)
    b1r = jnp.asarray(b1, jnp.float32).reshape(1, nhid)
    alphar = jnp.asarray(alpha, jnp.float32).reshape(1, nhid)
    w2f = jnp.asarray(w2, jnp.float32).reshape(nhid, 2)
    b2f = jnp.asarray(b2, jnp.float32).reshape(2)
    w2d = (w2f[:, 1] - w2f[:, 0]).reshape(1, nhid)       # (1, nhid)
    b2d = (b2f[1] - b2f[0]).reshape(1, 1)                # (1, 1)
    return (w1a, w1b, b1r, alphar, w2d, b2d)


def _round_down(x, m):
    return (x // m) * m


# ----------------------------------------------------------------------------
# Forward wrapper
# ----------------------------------------------------------------------------
def head_test_forward(feature1, feature2, prepared, no_list=True, *, block_b=1024):
    """Batched branch of HEAD_test.forward: returns softmax(logits)[:, 1], shape (B,).

    `prepared` should come from `prepare_head_params` (a raw 5-tuple is accepted
    but re-prepares weights every call — hoist it).  `no_list=False` in PyTorch
    only converts the same values to a Python list (host glue).
    """
    if len(prepared) == 5:   # convenience slow path
        prepared = prepare_head_params(prepared)
    w1a, w1b, b1, alpha, w2d, b2d = prepared
    nhid = w1a.shape[0]

    B = feature1.shape[0]
    assert feature1.shape == (B, nhid) and feature2.shape == (B, nhid)

    # Features streamed in their native dtype (pass bf16 for max bandwidth).
    f1, f2 = feature1, feature2
    b_rows = B
    if b_rows < 8:                       # tiny batch: pad up to one sublane tile
        pad = ((0, 8 - b_rows), (0, 0))
        f1 = jnp.pad(f1, pad)
        f2 = jnp.pad(f2, pad)
        b_rows = 8

    # ---- batch tile selection -------------------------------------------------
    align = 16 if b_rows >= 16 else 8    # 16 keeps bf16 sublane packing clean
    block_b = max(align, _round_down(block_b, align))
    tb = max(align, min(block_b, _round_down(b_rows, align)))
    # v7x megacore: make sure the "parallel" batch axis has >= 2 blocks when
    # there is enough work to split across both TensorCores.
    if b_rows >= 1024 and pl.cdiv(b_rows, tb) < 2:
        tb = max(align, _round_down((b_rows + 1) // 2, align))

    f_item = f1.dtype.itemsize
    w_item = w1a.dtype.itemsize

    def vmem_need(t):
        return (2 * 2 * t * nhid * f_item          # f1/f2 tiles, double-buffered
                + 2 * 2 * nhid * nhid * w_item     # W1a/W1b (2 pipeline buffers)
                + 2 * (3 * nhid + 1) * 4           # b1, alpha, w2d, b2d
                + 2 * t * 4)                       # output tile

    # Keep the working set well under scoped VMEM (v7x = 64 MiB physical).
    while tb > align and vmem_need(tb) > (30 << 20):
        tb = max(align, _round_down(tb // 2, align))

    n_blocks = pl.cdiv(b_rows, tb)       # last block may be partial (no jnp.pad)

    cp_kwargs = {}
    need = vmem_need(tb)
    if need > (16 << 20):
        cp_kwargs["vmem_limit_bytes"] = int(min(2 * need, 96 << 20))

    cost = pl.CostEstimate(
        flops=2 * B * (2 * nhid) * nhid + 6 * B * nhid,
        transcendentals=B,
        bytes_accessed=(B * nhid * (f1.dtype.itemsize + f2.dtype.itemsize)
                        + 2 * nhid * nhid * w_item
                        + (3 * nhid + 1) * 4
                        + B * 4),
    )

    row_map = lambda i: (i, 0)
    const_map = lambda i: (0, 0)

    pred = pl.pallas_call(
        _head_kernel,
        out_shape=jax.ShapeDtypeStruct((n_blocks, 1, tb), jnp.float32),
        grid=(n_blocks,),
        in_specs=[
            pl.BlockSpec((tb, nhid), row_map),        # feature1 tile
            pl.BlockSpec((tb, nhid), row_map),        # feature2 tile
            pl.BlockSpec((nhid, nhid), const_map),    # W1a (resident)
            pl.BlockSpec((nhid, nhid), const_map),    # W1b (resident)
            pl.BlockSpec((1, nhid), const_map),       # b1
            pl.BlockSpec((1, nhid), const_map),       # alpha
            pl.BlockSpec((1, nhid), const_map),       # W2 column diff (row layout)
            pl.BlockSpec((1, 1), const_map),          # b2 diff
        ],
        out_specs=pl.BlockSpec((None, 1, tb), lambda i: (i, 0, 0)),  # lane-dense
        compiler_params=pltpu.CompilerParams(
            dimension_semantics=("parallel",), **cp_kwargs),
        cost_estimate=cost,
    )(f1, f2, w1a, w1b, b1, alpha, w2d, b2d)

    score = pred.reshape(-1)[:B]
    return score


def head_test_forward_single(feature1_1d, feature2_1d, prepared):
    """1-D branch of HEAD_test.forward: returns is_same (pred[0,1] >= pred[0,0])."""
    # TODO(synk): the boolean branch is host-side Python control flow in the
    # original module; here it reduces to score >= 0.5.
    score = head_test_forward(feature1_1d.reshape(1, -1),
                              feature2_1d.reshape(1, -1), prepared)
    return bool(score[0] >= 0.5)


# ----------------------------------------------------------------------------
# Params / reference
# ----------------------------------------------------------------------------
def init_params(key, nhid):
    """Deterministic init matching nn.Linear / nn.PReLU shapes, pre-transposed."""
    k1, k2, k3, k4 = jax.random.split(key, 4)
    bound1 = 1.0 / jnp.sqrt(2.0 * nhid)
    w1 = jax.random.uniform(k1, (nhid, 2 * nhid), jnp.float32, -bound1, bound1)
    b1 = jax.random.uniform(k2, (nhid,), jnp.float32, -bound1, bound1)
    alpha = jnp.full((nhid,), 0.25, jnp.float32)          # PyTorch PReLU default
    bound2 = 1.0 / jnp.sqrt(float(nhid))
    w2 = jax.random.uniform(k3, (2, nhid), jnp.float32, -bound2, bound2)
    b2 = jax.random.uniform(k4, (2,), jnp.float32, -bound2, bound2)
    return (
        w1.T,                    # (2*nhid, nhid)
        b1.reshape(1, nhid),     # (1, nhid)
        alpha.reshape(1, nhid),  # (1, nhid)
        w2.T,                    # (nhid, 2)
        b2.reshape(1, 2),        # (1, 2)
    )


def reference_forward(feature1, feature2, params):
    """Pure-JAX reference of the original module's batched branch (pred[:, 1])."""
    w1, b1, alpha, w2, b2 = params
    x = jnp.concatenate([feature1, feature2], axis=1).astype(jnp.float32)
    h = x @ w1 + b1
    h = jnp.where(h >= 0.0, h, alpha * h)
    logits = h @ w2 + b2
    return jax.nn.softmax(logits, axis=1)[:, 1]


# ----------------------------------------------------------------------------
# Smoke test
# ----------------------------------------------------------------------------
if __name__ == "__main__":
    nhid = 32
    key = jax.random.PRNGKey(0)
    kf1, kf2, kp = jax.random.split(key, 3)
    params = init_params(kp, nhid)

    prep_f32 = prepare_head_params(params, weight_dtype=jnp.float32)   # exact
    prep_bf16 = prepare_head_params(params)                            # default (bf16 weights)

    # Batched branch, f32 weights + f32 features (tight tolerance).
    B = 8
    feature1 = jax.random.normal(kf1, (B, nhid), jnp.float32)
    feature2 = jax.random.normal(kf2, (B, nhid), jnp.float32)
    ref = reference_forward(feature1, feature2, params)
    score = jax.block_until_ready(head_test_forward(feature1, feature2, prep_f32))
    assert score.shape == (B,)
    assert jnp.allclose(score, ref, atol=2e-3, rtol=2e-3), (score, ref)

    # Default bandwidth-optimized path: bf16 weights + bf16 feature streams.
    score_bf16 = jax.block_until_ready(
        head_test_forward(feature1.astype(jnp.bfloat16),
                          feature2.astype(jnp.bfloat16), prep_bf16))
    assert jnp.allclose(score_bf16, ref, atol=5e-2, rtol=5e-2), (score_bf16, ref)

    # Ragged batch (B not a multiple of the tile) exercises the partial-block path.
    B2 = 13
    f1b = jax.random.normal(jax.random.PRNGKey(7), (B2, nhid), jnp.float32)
    f2b = jax.random.normal(jax.random.PRNGKey(8), (B2, nhid), jnp.float32)
    score2 = jax.block_until_ready(head_test_forward(f1b, f2b, prep_f32))
    ref2 = reference_forward(f1b, f2b, params)
    assert score2.shape == (B2,)
    assert jnp.allclose(score2, ref2, atol=2e-3, rtol=2e-3), (score2, ref2)

    # Single-pair branch (B < 8 padding path + boolean decision).
    is_same = head_test_forward_single(feature1[0], feature2[0], prep_f32)
    assert isinstance(is_same, bool)
    assert is_same == bool(ref[0] >= 0.5)

    print("KERNEL_OK")
</pallas_src>

<mosaic_0001>
module attributes {stable_mosaic.version = 11 : i64} {
  func.func @_head_kernel(%arg0: i32, %arg1: memref<8x32xf32, #tpu.memory_space<vmem>>, %arg2: memref<8x32xf32, #tpu.memory_space<vmem>>, %arg3: memref<32x32xf32, #tpu.memory_space<vmem>>, %arg4: memref<32x32xf32, #tpu.memory_space<vmem>>, %arg5: memref<1x32xf32, #tpu.memory_space<vmem>>, %arg6: memref<1x32xf32, #tpu.memory_space<vmem>>, %arg7: memref<1x32xf32, #tpu.memory_space<vmem>>, %arg8: memref<1x1xf32, #tpu.memory_space<vmem>>, %arg9: memref<1x1x8xf32, #tpu.memory_space<vmem>>) attributes {dimension_semantics = [#tpu.dimension_semantics<parallel>], iteration_bounds = array<i64: 1>, scalar_prefetch = 0 : i64, scratch_operands = 0 : i64, tpu.core_type = #tpu.core_type<tc>, window_params = [{transform_indices = @transform_0, window_bounds = array<i64: 8, 32>}, {transform_indices = @transform_1, window_bounds = array<i64: 8, 32>}, {pipeline_mode = #tpu.pipeline_mode<synchronous>, transform_indices = @transform_2, window_bounds = array<i64: 32, 32>}, {pipeline_mode = #tpu.pipeline_mode<synchronous>, transform_indices = @transform_3, window_bounds = array<i64: 32, 32>}, {pipeline_mode = #tpu.pipeline_mode<synchronous>, transform_indices = @transform_4, window_bounds = array<i64: 1, 32>}, {pipeline_mode = #tpu.pipeline_mode<synchronous>, transform_indices = @transform_5, window_bounds = array<i64: 1, 32>}, {pipeline_mode = #tpu.pipeline_mode<synchronous>, transform_indices = @transform_6, window_bounds = array<i64: 1, 32>}, {pipeline_mode = #tpu.pipeline_mode<synchronous>, transform_indices = @transform_7, window_bounds = array<i64: 1, 1>}, {transform_indices = @transform_8, window_bounds = array<i64: 1, 1, 8>}]} {
    %c0 = arith.constant 0 : index
    %c0_0 = arith.constant 0 : index
    %0 = vector.load %arg1[%c0, %c0_0] : memref<8x32xf32, #tpu.memory_space<vmem>>, vector<8x32xf32>
    %c0_1 = arith.constant 0 : index
    %c0_2 = arith.constant 0 : index
    %1 = vector.load %arg3[%c0_1, %c0_2] : memref<32x32xf32, #tpu.memory_space<vmem>>, vector<32x32xf32>
    %cst = arith.constant dense<0.000000e+00> : vector<8x32xf32>
    %2 = tpu.matmul %0, %1, %cst {dimension_numbers = #tpu.dot_dimension_numbers<[1], [0], [0], [1], [0, 0, 1, 1], [], []>} : vector<8x32xf32>, vector<32x32xf32>, vector<8x32xf32> -> vector<8x32xf32>
    %c0_3 = arith.constant 0 : index
    %c0_4 = arith.constant 0 : index
    %3 = vector.load %arg2[%c0_3, %c0_4] : memref<8x32xf32, #tpu.memory_space<vmem>>, vector<8x32xf32>
    %c0_5 = arith.constant 0 : index
    %c0_6 = arith.constant 0 : index
    %4 = vector.load %arg4[%c0_5, %c0_6] : memref<32x32xf32, #tpu.memory_space<vmem>>, vector<32x32xf32>
    %cst_7 = arith.constant dense<0.000000e+00> : vector<8x32xf32>
    %5 = tpu.matmul %3, %4, %cst_7 {dimension_numbers = #tpu.dot_dimension_numbers<[1], [0], [0], [1], [0, 0, 1, 1], [], []>} : vector<8x32xf32>, vector<32x32xf32>, vector<8x32xf32> -> vector<8x32xf32>
    %6 = arith.addf %2, %5 : vector<8x32xf32>
    %c0_8 = arith.constant 0 : index
    %c0_9 = arith.constant 0 : index
    %7 = vector.load %arg5[%c0_8, %c0_9] : memref<1x32xf32, #tpu.memory_space<vmem>>, vector<1x32xf32>
    %8 = vector.broadcast %7 : vector<1x32xf32> to vector<8x32xf32>
    %9 = arith.addf %6, %8 : vector<8x32xf32>
    %cst_10 = arith.constant 0.000000e+00 : f32
    %10 = vector.broadcast %cst_10 : f32 to vector<8x32xf32>
    %11 = arith.cmpf ogt, %9, %10 : vector<8x32xf32>
    %c0_11 = arith.constant 0 : index
    %c0_12 = arith.constant 0 : index
    %12 = vector.load %arg6[%c0_11, %c0_12] : memref<1x32xf32, #tpu.memory_space<vmem>>, vector<1x32xf32>
    %13 = vector.broadcast %12 : vector<1x32xf32> to vector<8x32xf32>
    %14 = arith.mulf %13, %9 : vector<8x32xf32>
    %15 = arith.select %11, %9, %14 : vector<8x32xi1>, vector<8x32xf32>
    %c0_13 = arith.constant 0 : index
    %c0_14 = arith.constant 0 : index
    %16 = vector.load %arg7[%c0_13, %c0_14] : memref<1x32xf32, #tpu.memory_space<vmem>>, vector<1x32xf32>
    %cst_15 = arith.constant dense<0.000000e+00> : vector<1x8xf32>
    %17 = tpu.matmul %16, %15, %cst_15 {dimension_numbers = #tpu.dot_dimension_numbers<[1], [1], [0], [0], [0, 0, 1, 0], [], []>} : vector<1x32xf32>, vector<8x32xf32>, vector<1x8xf32> -> vector<1x8xf32>
    %c0_16 = arith.constant 0 : index
    %c0_17 = arith.constant 0 : index
    %18 = vector.load %arg8[%c0_16, %c0_17] : memref<1x1xf32, #tpu.memory_space<vmem>>, vector<1x1xf32>
    %19 = vector.broadcast %18 : vector<1x1xf32> to vector<1x8xf32>
    %20 = arith.addf %17, %19 : vector<1x8xf32>
    %cst_18 = arith.constant 0.000000e+00 : f32
    %21 = vector.broadcast %cst_18 : f32 to vector<1x8xf32>
    %22 = arith.subf %21, %20 : vector<1x8xf32>
    %23 = math.exp %22 : vector<1x8xf32>
    %cst_19 = arith.constant 1.000000e+00 : f32
    %24 = vector.broadcast %cst_19 : f32 to vector<1x8xf32>
    %25 = arith.addf %24, %23 : vector<1x8xf32>
    %cst_20 = arith.constant 1.000000e+00 : f32
    %26 = vector.broadcast %cst_20 : f32 to vector<1x8xf32>
    %27 = arith.divf %26, %25 : vector<1x8xf32>
    %c0_21 = arith.constant 0 : index
    %c0_22 = arith.constant 0 : index
    %c0_23 = arith.constant 0 : index
    %28 = vector.load %arg9[%c0_21, %c0_22, %c0_23] : memref<1x1x8xf32, #tpu.memory_space<vmem>>, vector<1x1x8xf32>
    %29 = vector.shape_cast %28 : vector<1x1x8xf32> to vector<1x8xf32>
    %30 = vector.shape_cast %27 : vector<1x8xf32> to vector<1x1x8xf32>
    tpu.vector_store %arg9[%c0_21, %c0_22, %c0_23], %30 {strides = array<i32>} : memref<1x1x8xf32, #tpu.memory_space<vmem>>, vector<1x1x8xf32>,
    return
  }
  func.func @transform_0(%arg0: i32) -> (i32, i32) {
    %c0_i32 = arith.constant 0 : i32
    %c0_i32_0 = arith.constant 0 : i32
    return %arg0, %c0_i32 : i32, i32
  }
  func.func @transform_1(%arg0: i32) -> (i32, i32) {
    %c0_i32 = arith.constant 0 : i32
    %c0_i32_0 = arith.constant 0 : i32
    return %arg0, %c0_i32 : i32, i32
  }
  func.func @transform_2(%arg0: i32) -> (i32, i32) {
    %c0_i32 = arith.constant 0 : i32
    %c0_i32_0 = arith.constant 0 : i32
    %c0_i32_1 = arith.constant 0 : i32
    return %c0_i32, %c0_i32_0 : i32, i32
  }
  func.func @transform_3(%arg0: i32) -> (i32, i32) {
    %c0_i32 = arith.constant 0 : i32
    %c0_i32_0 = arith.constant 0 : i32
    %c0_i32_1 = arith.constant 0 : i32
    return %c0_i32, %c0_i32_0 : i32, i32
  }
  func.func @transform_4(%arg0: i32) -> (i32, i32) {
    %c0_i32 = arith.constant 0 : i32
    %c0_i32_0 = arith.constant 0 : i32
    %c0_i32_1 = arith.constant 0 : i32
    return %c0_i32, %c0_i32_0 : i32, i32
  }
  func.func @transform_5(%arg0: i32) -> (i32, i32) {
    %c0_i32 = arith.constant 0 : i32
    %c0_i32_0 = arith.constant 0 : i32
    %c0_i32_1 = arith.constant 0 : i32
    return %c0_i32, %c0_i32_0 : i32, i32
  }
  func.func @transform_6(%arg0: i32) -> (i32, i32) {
    %c0_i32 = arith.constant 0 : i32
    %c0_i32_0 = arith.constant 0 : i32
    %c0_i32_1 = arith.constant 0 : i32
    return %c0_i32, %c0_i32_0 : i32, i32
  }
  func.func @transform_7(%arg0: i32) -> (i32, i32) {
    %c0_i32 = arith.constant 0 : i32
    %c0_i32_0 = arith.constant 0 : i32
    %c0_i32_1 = arith.constant 0 : i32
    return %c0_i32, %c0_i32_0 : i32, i32
  }
  func.func @transform_8(%arg0: i32) -> (i32, i32, i32) {
    %c0_i32 = arith.constant 0 : i32
    %c0_i32_0 = arith.constant 0 : i32
    %c0_i32_1 = arith.constant 0 : i32
    return %arg0, %c0_i32, %c0_i32_0 : i32, i32, i32
  }
}

</mosaic_0001>

<llo_original>
// kernel: tpu_custom_call.1
$region0: #{tpu_custom_call.1}
  #allocation0 [shape = 'u32[]', space=smem, size = 0x4, offset = 0x4, fixed_abs, tag = 'smem constant byte address 0x4 - core index']
  #allocation1 [shape = 'u32[144,128]{1,0:T(1,128)}', space=vmem, size = 0x12000, scoped, tag = 'internal scratch']
  #allocation2 [shape = 'f32[1,1]{1,0:T(1,128)S(1)}', space=vmem, size = 0x200, scoped, tag = 'scoped memory for tpu_custom_call.1']
  %s0 = inlined_call_operand.hbm [shape: f32[8,32], index: 0, kind: input, shape index: {}]
  %s1 = inlined_call_operand.hbm [shape: f32[8,32], index: 1, kind: input, shape index: {}]
  %s2 = inlined_call_operand.hbm [shape: f32[32,32], index: 2, kind: input, shape index: {}]
  %s3 = inlined_call_operand.hbm [shape: f32[32,32], index: 3, kind: input, shape index: {}]
  %s4 = inlined_call_operand.vmem [shape: f32[1,32], index: 4, kind: input, shape index: {}]
  %s5 = inlined_call_operand.vmem [shape: f32[1,32], index: 5, kind: input, shape index: {}]
  %s6 = inlined_call_operand.vmem [shape: f32[1,32], index: 6, kind: input, shape index: {}]
  %s7 = inlined_call_operand.<no memory space> [shape: f32[1,1], index: 7, kind: input, shape index: {}]
  %s8 = inlined_call_operand.hbm [shape: f32[1,1,8], index: 8, kind: output, shape index: {}]
  %s9 = sld [smem:[#allocation0]]
  $region58: #{tpu_custom_call.1} parent=0
    _
  %s11 = ssub.s32 1, %s9
  %s12 = scalar_select 0, %s11, %s9
  %v13 = vstv %s7
  %14 = vst [vmem:[#allocation2] sm:$0x1] %v13
  $region1: #{tpu_custom_call.1} parent=0
    #allocation3 [shape = 'u8[4096]{0}', space=vmem, size = 0x1000, scoped, tag = 'input window, operand 0, single buffered']
    #allocation4 [shape = 's32[1]{0}', space=sflag, size = 0x4, scoped, tag = 'scoped memory for tpu_custom_call.1']
    #allocation5 [shape = 's32[1]{0}', space=sflag, size = 0x4, scoped, tag = 'scoped memory for tpu_custom_call.1']
    #allocation6 [shape = 'u8[4096]{0}', space=vmem, size = 0x1000, scoped, tag = 'input window, operand 1, single buffered']
    #allocation7 [shape = 's32[1]{0}', space=sflag, size = 0x4, scoped, tag = 'scoped memory for tpu_custom_call.1']
    #allocation8 [shape = 'u8[16384]{0}', space=vmem, size = 0x4000, scoped, tag = 'input window, operand 2, single buffered']
    #allocation9 [shape = 'u8[16384]{0}', space=vmem, size = 0x4000, scoped, tag = 'input window, operand 3, single buffered']
    #allocation10 [shape = 's32[1]{0}', space=sflag, size = 0x4, scoped, tag = 'scoped memory for tpu_custom_call.1']
    #allocation11 [shape = 'u8[512]{0}', space=vmem, size = 0x400, scoped, tag = 'output window, operand 0, single buffered']
    %15 = vsyncpa [#allocation4], 0
    %16 = vsyncpa [#allocation7], 0
    %17 = vsyncpa [#allocation10], 0
    %18 = vsyncpa [#allocation5], 0
    // Predicated region
    $region2: #{tpu_custom_call.1} parent=1 // pred_check
      _
    $region3: #{tpu_custom_call.1} parent=1 // pred_check_branch
      %20 = sbr.rel (0) target = $region5
    $region4: #{tpu_custom_call.1} parent=1 // pred_region
      %s22 = ssub.s32 128, 128
      %23 = vsyncadd [#allocation4], %s22
      %s25 = sshll.u32 [#allocation3], 4
      %s26 = int_to_ptr.vmem [resolvable:$true] %s25
      %28 = dma.hbm_to_vmem [thread:$0]  %s0, 128, %s26, [#allocation4]
    $region5: #{tpu_custom_call.1} parent=1 // pred_fallthru
      _
    // Predicated region
    $region6: #{tpu_custom_call.1} parent=1 // pred_check
      _
    $region7: #{tpu_custom_call.1} parent=1 // pred_check_branch
      %30 = sbr.rel (0) target = $region9
    $region8: #{tpu_custom_call.1} parent=1 // pred_region
      %s32 = ssub.s32 128, 128
      %33 = vsyncadd [#allocation7], %s32
      %s35 = sshll.u32 [#allocation6], 4
      %s36 = int_to_ptr.vmem [resolvable:$true] %s35
      %38 = dma.hbm_to_vmem [thread:$0]  %s1, 128, %s36, [#allocation7]
    $region9: #{tpu_custom_call.1} parent=1 // pred_fallthru
      _
    // Predicated region
    $region10: #{tpu_custom_call.1} parent=1 // pred_check
      _
    $region11: #{tpu_custom_call.1} parent=1 // pred_check_branch
      %40 = sbr.rel (0) target = $region13
    $region12: #{tpu_custom_call.1} parent=1 // pred_region
      %s42 = ssub.s32 512, 512
      %43 = vsyncadd [#allocation7], %s42
      %s44 = sshll.u32 [#allocation8], 4
      %s45 = int_to_ptr.vmem [resolvable:$true] %s44
      %50 = dma.hbm_to_vmem [thread:$0]  %s2, 512, %s45, [#allocation7], 128, 128, 8
    $region13: #{tpu_custom_call.1} parent=1 // pred_fallthru
      _
    // Predicated region
    $region14: #{tpu_custom_call.1} parent=1 // pred_check
      _
    $region15: #{tpu_custom_call.1} parent=1 // pred_check_branch
      %52 = sbr.rel (0) target = $region17
    $region16: #{tpu_custom_call.1} parent=1 // pred_region
      %s54 = ssub.s32 512, 512
      %55 = vsyncadd [#allocation10], %s54
      %s56 = sshll.u32 [#allocation9], 4
      %s57 = int_to_ptr.vmem [resolvable:$true] %s56
      %62 = dma.hbm_to_vmem [thread:$0]  %s3, 512, %s57, [#allocation10], 128, 128, 8
    $region17: #{tpu_custom_call.1} parent=1 // pred_fallthru
      _
    // Predicated region
    $region18: #{tpu_custom_call.1} parent=1 // pred_check
      _
    $region19: #{tpu_custom_call.1} parent=1 // pred_check_branch
      %64 = sbr.rel (0) target = $region21
    $region20: #{tpu_custom_call.1} parent=1 // pred_region
      _
    $region21: #{tpu_custom_call.1} parent=1 // pred_fallthru
      _
    // Predicated region
    $region22: #{tpu_custom_call.1} parent=1 // pred_check
      _
    $region23: #{tpu_custom_call.1} parent=1 // pred_check_branch
      %66 = sbr.rel (0) target = $region25
    $region24: #{tpu_custom_call.1} parent=1 // pred_region
      _
    $region25: #{tpu_custom_call.1} parent=1 // pred_fallthru
      _
    // Predicated region
    $region26: #{tpu_custom_call.1} parent=1 // pred_check
      _
    $region27: #{tpu_custom_call.1} parent=1 // pred_check_branch
      %68 = sbr.rel (0) target = $region29
    $region28: #{tpu_custom_call.1} parent=1 // pred_region
      _
    $region29: #{tpu_custom_call.1} parent=1 // pred_fallthru
      _
    // Predicated region
    $region30: #{tpu_custom_call.1} parent=1 // pred_check
      _
    $region31: #{tpu_custom_call.1} parent=1 // pred_check_branch
      %70 = sbr.rel (0) target = $region33
    $region32: #{tpu_custom_call.1} parent=1 // pred_region
      _
    $region33: #{tpu_custom_call.1} parent=1 // pred_fallthru
      _
    // Predicated region
    $region34: #{tpu_custom_call.1} parent=1 // pred_check
      _
    $region35: #{tpu_custom_call.1} parent=1 // pred_check_branch
      %72 = sbr.rel (0) target = $region37
    $region36: #{tpu_custom_call.1} parent=1 // pred_region
      %73 = dma.done [#allocation4], 128
    $region37: #{tpu_custom_call.1} parent=1 // pred_fallthru
      _
    // Predicated region
    $region38: #{tpu_custom_call.1} parent=1 // pred_check
      _
    $region39: #{tpu_custom_call.1} parent=1 // pred_check_branch
      %75 = sbr.rel (0) target = $region41
    $region40: #{tpu_custom_call.1} parent=1 // pred_region
      %76 = dma.done [#allocation7], 128
    $region41: #{tpu_custom_call.1} parent=1 // pred_fallthru
      _
    // Predicated region
    $region42: #{tpu_custom_call.1} parent=1 // pred_check
      _
    $region43: #{tpu_custom_call.1} parent=1 // pred_check_branch
      %78 = sbr.rel (0) target = $region45
    $region44: #{tpu_custom_call.1} parent=1 // pred_region
      %79 = dma.done [#allocation7], 512
    $region45: #{tpu_custom_call.1} parent=1 // pred_fallthru
      _
    // Predicated region
    $region46: #{tpu_custom_call.1} parent=1 // pred_check
      _
    $region47: #{tpu_custom_call.1} parent=1 // pred_check_branch
      %81 = sbr.rel (0) target = $region49
    $region48: #{tpu_custom_call.1} parent=1 // pred_region
      %82 = dma.done [#allocation10], 512
    $region49: #{tpu_custom_call.1} parent=1 // pred_fallthru
      _
    %v83 = vld [vmem:[#allocation3] sm:$0xff]
    %v84 = vld [vmem:[#allocation8] sm:$0xff]
    %v85 = vld [vmem:[#allocation8 + $0x8] sm:$0xff]
    %v86 = vld [vmem:[#allocation8 + $0x10] sm:$0xff]
    %v87 = vld [vmem:[#allocation8 + $0x18] sm:$0xff]
    %v88 = vld [vmem:[#allocation6] sm:$0xff]
    %v89 = vld [vmem:[#allocation9] sm:$0xff]
    %v90 = vld [vmem:[#allocation9 + $0x8] sm:$0xff]
    %v91 = vld [vmem:[#allocation9 + $0x10] sm:$0xff]
    %v92 = vld [vmem:[#allocation9 + $0x18] sm:$0xff]
    %vm93 = vcmask 261120
    %v95 = vsel %vm93, %v88, 0
    %97 = vmatprep.subr.mxu0 0.0
    %98 = vmatpush1.msra.mxu0 0.0
    %99 = vmatprep.subr.mxu0 0.0
    %100 = vmatpush1.msra.mxu0 0.0
    %101 = vmatprep.subr.mxu0 0.0
    %102 = vmatpush1.msra.mxu0 0.0
    %103 = vmatprep.subr.mxu0 0.0
    %104 = vmatpush1.msra.mxu0 0.0
    %105 = vmatprep.subr.mxu0 0.0
    %106 = vmatpush1.msra.mxu0 0.0
    %107 = vmatprep.subr.mxu0 0.0
    %108 = vmatpush1.msra.mxu0 0.0
    %109 = vmatprep.subr.mxu0 0.0
    %110 = vmatpush1.msra.mxu0 0.0
    %111 = vmatprep.subr.mxu0 0.0
    %112 = vmatpush1.msra.mxu0 0.0
    %113 = vmatprep.subr.mxu0 0.0
    %114 = vmatpush1.msra.mxu0 0.0
    %115 = vmatprep.subr.mxu0 0.0
    %116 = vmatpush1.msra.mxu0 0.0
    %117 = vmatprep.subr.mxu0 0.0
    %118 = vmatpush1.msra.mxu0 0.0
    %119 = vmatprep.subr.mxu0 0.0
    %120 = vmatpush1.msra.mxu0 0.0
    %121 = vmatprep.subr.mxu0 0.0
    %122 = vmatpush1.msra.mxu0 %v92
    %123 = vmatprep.subr.mxu0 0.0
    %124 = vmatpush1.msra.mxu0 %v91
    %125 = vmatprep.subr.mxu0 0.0
    %126 = vmatpush1.msra.mxu0 %v90
    %127 = vmatprep.subr.mxu0 0.0
    %128 = vmatpush1.msra.mxu0 %v89
    %129 = vmatprep.subr.mxu0 0.0
    %130 = vmatpush2.msra.mxu0 0.0
    %131 = vmatprep.subr.mxu0 0.0
    %132 = vmatpush2.msra.mxu0 0.0
    %133 = vmatprep.subr.mxu0 0.0
    %134 = vmatpush2.msra.mxu0 0.0
    %135 = vmatprep.subr.mxu0 0.0
    %136 = vmatpush2.msra.mxu0 0.0
    %137 = vmatprep.subr.mxu0 0.0
    %138 = vmatpush2.msra.mxu0 0.0
    %139 = vmatprep.subr.mxu0 0.0
    %140 = vmatpush2.msra.mxu0 0.0
    %141 = vmatprep.subr.mxu0 0.0
    %142 = vmatpush2.msra.mxu0 0.0
    %143 = vmatprep.subr.mxu0 0.0
    %144 = vmatpush2.msra.mxu0 0.0
    %145 = vmatprep.subr.mxu0 0.0
    %146 = vmatpush2.msra.mxu0 0.0
    %147 = vmatprep.subr.mxu0 0.0
    %148 = vmatpush2.msra.mxu0 0.0
    %149 = vmatprep.subr.mxu0 0.0
    %150 = vmatpush2.msra.mxu0 0.0
    %151 = vmatprep.subr.mxu0 0.0
    %152 = vmatpush2.msra.mxu0 0.0
    %153 = vmatprep.subr.mxu0 0.0
    %154 = vmatpush2.msra.mxu0 0.0
    %155 = vmatprep.subr.mxu0 0.0
    %156 = vmatpush2.msra.mxu0 0.0
    %157 = vmatprep.subr.mxu0 0.0
    %158 = vmatpush2.msra.mxu0 0.0
    %159 = vmatprep.subr.mxu0 0.0
    %160 = vmatpush2.msra.mxu0 0.0
    %161 = vmatprep.mubr.f32.mxu0 0.0
    %162 = vmatmul.mubr.f32.gmra.mxu0 %v95
    %v163 = vpop.f32.mrf.mxu0
    %v164 = vadd.f32 0.0, %v163
    %v165 = vpop.f32.mrf.mxu0
    %166 = vdwg.mxu0
    %v168 = vsel %vm93, %v83, 0
    %170 = vmatprep.subr.mxu0 0.0
    %171 = vmatpush1.msra.mxu0 0.0
    %172 = vmatprep.subr.mxu0 0.0
    %173 = vmatpush1.msra.mxu0 0.0
    %174 = vmatprep.subr.mxu0 0.0
    %175 = vmatpush1.msra.mxu0 0.0
    %176 = vmatprep.subr.mxu0 0.0
    %177 = vmatpush1.msra.mxu0 0.0
    %178 = vmatprep.subr.mxu0 0.0
    %179 = vmatpush1.msra.mxu0 0.0
    %180 = vmatprep.subr.mxu0 0.0
    %181 = vmatpush1.msra.mxu0 0.0
    %182 = vmatprep.subr.mxu0 0.0
    %183 = vmatpush1.msra.mxu0 0.0
    %184 = vmatprep.subr.mxu0 0.0
    %185 = vmatpush1.msra.mxu0 0.0
    %186 = vmatprep.subr.mxu0 0.0
    %187 = vmatpush1.msra.mxu0 0.0
    %188 = vmatprep.subr.mxu0 0.0
    %189 = vmatpush1.msra.mxu0 0.0
    %190 = vmatprep.subr.mxu0 0.0
    %191 = vmatpush1.msra.mxu0 0.0
    %192 = vmatprep.subr.mxu0 0.0
    %193 = vmatpush1.msra.mxu0 0.0
    %194 = vmatprep.subr.mxu0 0.0
    %195 = vmatpush1.msra.mxu0 %v87
    %196 = vmatprep.subr.mxu0 0.0
    %197 = vmatpush1.msra.mxu0 %v86
    %198 = vmatprep.subr.mxu0 0.0
    %199 = vmatpush1.msra.mxu0 %v85
    %200 = vmatprep.subr.mxu0 0.0
    %201 = vmatpush1.msra.mxu0 %v84
    %202 = vmatprep.subr.mxu0 0.0
    %203 = vmatpush2.msra.mxu0 0.0
    %204 = vmatprep.subr.mxu0 0.0
    %205 = vmatpush2.msra.mxu0 0.0
    %206 = vmatprep.subr.mxu0 0.0
    %207 = vmatpush2.msra.mxu0 0.0
    %208 = vmatprep.subr.mxu0 0.0
    %209 = vmatpush2.msra.mxu0 0.0
    %210 = vmatprep.subr.mxu0 0.0
    %211 = vmatpush2.msra.mxu0 0.0
    %212 = vmatprep.subr.mxu0 0.0
    %213 = vmatpush2.msra.mxu0 0.0
    %214 = vmatprep.subr.mxu0 0.0
    %215 = vmatpush2.msra.mxu0 0.0
    %216 = vmatprep.subr.mxu0 0.0
    %217 = vmatpush2.msra.mxu0 0.0
    %218 = vmatprep.subr.mxu0 0.0
    %219 = vmatpush2.msra.mxu0 0.0
    %220 = vmatprep.subr.mxu0 0.0
    %221 = vmatpush2.msra.mxu0 0.0
    %222 = vmatprep.subr.mxu0 0.0
    %223 = vmatpush2.msra.mxu0 0.0
    %224 = vmatprep.subr.mxu0 0.0
    %225 = vmatpush2.msra.mxu0 0.0
    %226 = vmatprep.subr.mxu0 0.0
    %227 = vmatpush2.msra.mxu0 0.0
    %228 = vmatprep.subr.mxu0 0.0
    %229 = vmatpush2.msra.mxu0 0.0
    %230 = vmatprep.subr.mxu0 0.0
    %231 = vmatpush2.msra.mxu0 0.0
    %232 = vmatprep.subr.mxu0 0.0
    %233 = vmatpush2.msra.mxu0 0.0
    %234 = vmatprep.mubr.f32.mxu0 0.0
    %235 = vmatmul.mubr.f32.gmra.mxu0 %v168
    %v236 = vpop.f32.mrf.mxu0
    %v237 = vadd.f32 %v164, %v236
    %v238 = vpop.f32.mrf.mxu0
    %239 = vdwg.mxu0
    %v240 = vld [vmem:[%s4] sm:$0x1]
    %v242 = vlaneseq
    %v243 = vshrl.u32 %v242, 7
    %v244 = vsub.s32 0, %v243
    %v245 = vrot.slane %v240, %v244
    %v247 = vadd.f32 %v237, %v245
    %vm248 = vcmp.gt.f32.partialorder %v247, 0.0
    %v249 = vld [vmem:[%s5] sm:$0x1]
    %v251 = vlaneseq
    %v252 = vshrl.u32 %v251, 7
    %v253 = vsub.s32 0, %v252
    %v254 = vrot.slane %v249, %v253
    %v256 = vmul.f32 %v254, %v247
    %v257 = vsel %vm248, %v247, %v256
    %v258 = vld [vmem:[%s6] sm:$0x1]
    %v259 = vld [vmem:[#allocation2] sm:$0x1]
    %261 = vset.pattern.permute.xlu0 0
    %262 = vperm.xlu0 %261, %v259
    %v263 = vpop.permute.xlu0 %262
    %v265 = vlaneseq
    %v266 = vshrl.u32 %v265, 7
    %v267 = vsub.s32 0, %v266
    %v268 = vrot.slane %v263, %v267
    %v270 = vsel %vm93, %v258, 0
    %v273 = vsel %vm93, %v257, 0
    %275 = vmatprep.subr.mxu0 0.0
    %276 = vmatpush1.xpose.msra.mxu0 0.0
    %277 = vmatprep.subr.mxu0 0.0
    %278 = vmatpush1.xpose.msra.mxu0 0.0
    %279 = vmatprep.subr.mxu0 0.0
    %280 = vmatpush1.xpose.msra.mxu0 0.0
    %281 = vmatprep.subr.mxu0 0.0
    %282 = vmatpush1.xpose.msra.mxu0 0.0
    %283 = vmatprep.subr.mxu0 0.0
    %284 = vmatpush1.xpose.msra.mxu0 0.0
    %285 = vmatprep.subr.mxu0 0.0
    %286 = vmatpush1.xpose.msra.mxu0 0.0
    %287 = vmatprep.subr.mxu0 0.0
    %288 = vmatpush1.xpose.msra.mxu0 0.0
    %289 = vmatprep.subr.mxu0 0.0
    %290 = vmatpush1.xpose.msra.mxu0 0.0
    %291 = vmatprep.subr.mxu0 0.0
    %292 = vmatpush1.xpose.msra.mxu0 0.0
    %293 = vmatprep.subr.mxu0 0.0
    %294 = vmatpush1.xpose.msra.mxu0 0.0
    %295 = vmatprep.subr.mxu0 0.0
    %296 = vmatpush1.xpose.msra.mxu0 0.0
    %297 = vmatprep.subr.mxu0 0.0
    %298 = vmatpush1.xpose.msra.mxu0 0.0
    %299 = vmatprep.subr.mxu0 0.0
    %300 = vmatpush1.xpose.msra.mxu0 0.0
    %301 = vmatprep.subr.mxu0 0.0
    %302 = vmatpush1.xpose.msra.mxu0 0.0
    %303 = vmatprep.subr.mxu0 0.0
    %304 = vmatpush1.xpose.msra.mxu0 0.0
    %305 = vmatprep.subr.mxu0 0.0
    %306 = vmatpush1.xpose.msra.mxu0 %v273
    %307 = vmatprep.subr.mxu0 0.0
    %308 = vmatpush2.xpose.msra.mxu0 0.0
    %309 = vmatprep.subr.mxu0 0.0
    %310 = vmatpush2.xpose.msra.mxu0 0.0
    %311 = vmatprep.subr.mxu0 0.0
    %312 = vmatpush2.xpose.msra.mxu0 0.0
    %313 = vmatprep.subr.mxu0 0.0
    %314 = vmatpush2.xpose.msra.mxu0 0.0
    %315 = vmatprep.subr.mxu0 0.0
    %316 = vmatpush2.xpose.msra.mxu0 0.0
    %317 = vmatprep.subr.mxu0 0.0
    %318 = vmatpush2.xpose.msra.mxu0 0.0
    %319 = vmatprep.subr.mxu0 0.0
    %320 = vmatpush2.xpose.msra.mxu0 0.0
    %321 = vmatprep.subr.mxu0 0.0
    %322 = vmatpush2.xpose.msra.mxu0 0.0
    %323 = vmatprep.subr.mxu0 0.0
    %324 = vmatpush2.xpose.msra.mxu0 0.0
    %325 = vmatprep.subr.mxu0 0.0
    %326 = vmatpush2.xpose.msra.mxu0 0.0
    %327 = vmatprep.subr.mxu0 0.0
    %328 = vmatpush2.xpose.msra.mxu0 0.0
    %329 = vmatprep.subr.mxu0 0.0
    %330 = vmatpush2.xpose.msra.mxu0 0.0
    %331 = vmatprep.subr.mxu0 0.0
    %332 = vmatpush2.xpose.msra.mxu0 0.0
    %333 = vmatprep.subr.mxu0 0.0
    %334 = vmatpush2.xpose.msra.mxu0 0.0
    %335 = vmatprep.subr.mxu0 0.0
    %336 = vmatpush2.xpose.msra.mxu0 0.0
    %337 = vmatprep.subr.mxu0 0.0
    %338 = vmatpush2.xpose.msra.mxu0 0.0
    %339 = vmatprep.mubr.f32.mxu0 0.0
    %340 = vmatmul.mubr.f32.gmra.mxu0 %v270
    %v341 = vpop.f32.mrf.mxu0
    %v342 = vadd.f32 %v268, %v341
    %v343 = vpop.f32.mrf.mxu0
    %344 = vdwg.mxu0
    %v345 = vsub.f32 0.0, %v342
    %v346 = vmul.f32 %v345, 1.442695
    %v347 = vpow.pop %v346
    %v348 = vadd.f32 %v347, 1.0
    %v349 = vrcp.pop %v348
    %v350 = vmul.f32 1.0, %v349
    %vm351 = vcmask 57344
    %352 = vst.msk [vmem:[#allocation11] sm:$0x1] %vm351, %v350
    // Predicated region
    $region50: #{tpu_custom_call.1} parent=1 // pred_check
      _
    $region51: #{tpu_custom_call.1} parent=1 // pred_check_branch
      %354 = sbr.rel (0) target = $region53
    $region52: #{tpu_custom_call.1} parent=1 // pred_region
      %s356 = ssub.s32 16, 16
      %357 = vsyncadd [#allocation5], %s356
      %s359 = sshll.u32 [#allocation11], 4
      %s360 = int_to_ptr.vmem [resolvable:$true] %s359
      %362 = dma.vmem_to_hbm [thread:$0]  %s360, 16, %s8, [#allocation5]
    $region53: #{tpu_custom_call.1} parent=1 // pred_fallthru
      _
    // Predicated region
    $region54: #{tpu_custom_call.1} parent=1 // pred_check
      _
    $region55: #{tpu_custom_call.1} parent=1 // pred_check_branch
      %364 = sbr.rel (0) target = $region57
    $region56: #{tpu_custom_call.1} parent=1 // pred_region
      %365 = dma.done [#allocation5], 16
    $region57: #{tpu_custom_call.1} parent=1 // pred_fallthru
      _
    %366 = vsyncpa [#allocation4], 1
    %367 = vsyncpa [#allocation7], 1
    %368 = vsyncpa [#allocation10], 1
    %369 = vsyncpa [#allocation5], 1

</llo_original>
